<compile_context>
chip_gen: v6e
topology: v6e:2x2x1
jax: 0.10.0
libtpu: 0.0.40
codegen_flags: <defaults>
</compile_context>

<pallas_src>
import jax
import jax.numpy as jnp
from jax.experimental import pallas as pl
from jax.experimental.pallas import tpu as pltpu


_MAX_TILE_ROWS = 2048      # 2048 x 512 x 4B = 4 MiB per pipeline buffer


def _make_loss_kernel(*, lamda, n_rows, n_cls, tile_rows, lane,
                      n_valid_rows, total_elems, needs_row_mask):
    # All closed-over values are Python scalars -> jaxpr literals, so the
    # kernel captures no constants (the previous compile failure).
    inv_n = 1.0 / float(n_rows)
    mse_scale = float(lamda) / float(total_elems)

    def loss_kernel(logits_ref, labels_ref, x_ref, d_ref, out_ref, acc_ref):
        i = pl.program_id(0)
        n_i = pl.num_programs(0)

        # ---- step 0: init accumulator + tiny cross-entropy (hoisted here so
        # its exp/log/reduces hide under the first MSE DMAs instead of
        # extending the kernel tail). Runs exactly once.
        @pl.when(i == 0)
        def _init():
            acc_ref[...] = jnp.zeros_like(acc_ref)

            logits = logits_ref[...].astype(jnp.float32)          # (n_rows, n_cls)
            m = jnp.max(logits, axis=-1, keepdims=True)
            lse = m + jnp.log(jnp.sum(jnp.exp(logits - m), axis=-1,
                                      keepdims=True))
            labels = labels_ref[...]                              # (n_rows, 1) int32
            col = jax.lax.broadcasted_iota(jnp.int32, (n_rows, n_cls), 1)
            picked = jnp.sum(jnp.where(col == labels, logits, 0.0),
                             axis=-1, keepdims=True)
            ce = jnp.sum(lse - picked) * inv_n
            # Output block uses a constant index_map -> resident in VMEM for
            # the whole grid; park CE now, add the MSE term in the last step.
            out_ref[...] = jnp.broadcast_to(ce, out_ref.shape)

        # ---- hot path: streaming sum-of-squares (VPU only) ----
        x = x_ref[...].astype(jnp.float32)    # native-dtype DMA, cast per tile
        d = d_ref[...].astype(jnp.float32)
        diff = x - d
        if needs_row_mask:
            # Last tile overruns the array; OOB rows hold garbage. Select
            # before squaring so NaN garbage cannot propagate.
            row = (jax.lax.broadcasted_iota(jnp.int32, (tile_rows, lane), 0)
                   + i * tile_rows)
            diff = jnp.where(row < n_valid_rows, diff, 0.0)
        sq = diff * diff
        if tile_rows % 8 == 0:
            # Fold row groups onto the (8, lane) accumulator: pure element-wise
            # vreg adds, no cross-lane/sublane reduce in the hot loop.
            acc_ref[...] += jnp.sum(sq.reshape(tile_rows // 8, 8, lane), axis=0)
        else:
            # Tiny single-tile case (tile_rows == full row count, not mult. of 8).
            acc_ref[0:1, :] += jnp.sum(sq, axis=0, keepdims=True)

        # ---- last step: one cross-lane reduce + combine ----
        # NOTE: f32 accumulation; for >~1e9 elements consider compensated sums.
        @pl.when(i == n_i - 1)
        def _finalize():
            sse = jnp.sum(acc_ref[...])
            out_ref[...] = out_ref[...] + mse_scale * sse

    return loss_kernel


def custom_loss(output, labels, deconvs, inputs, lamda=1.0):
    """output: (N, C) logits; labels: (N,) int; deconvs/inputs: (B, C, H, W)."""
    n, num_classes = output.shape
    labels2d = labels.astype(jnp.int32).reshape(n, 1)

    total = 1
    for s in inputs.shape:
        total *= s

    # ---- lane-dense flat view for the MSE stream (no pad copy if possible) --
    lane = None
    for cand in (512, 256, 128):
        if total % cand == 0:
            lane = cand
            break
    x_flat = inputs.reshape(-1)
    d_flat = deconvs.reshape(-1)
    if lane is None:
        # Ragged element count: minimal zero-pad of BOTH tensors to the next
        # multiple of 128 (padded diffs are 0 -> SSE unchanged).
        # TODO(synk): this fallback still costs one extra HBM copy.
        lane = 128
        pad = (-total) % lane
        x_flat = jnp.pad(x_flat, (0, pad))
        d_flat = jnp.pad(d_flat, (0, pad))
    rows = x_flat.shape[0] // lane
    x2d = x_flat.reshape(rows, lane)
    d2d = d_flat.reshape(rows, lane)

    tile_rows = rows if rows <= _MAX_TILE_ROWS else _MAX_TILE_ROWS
    grid_steps = pl.cdiv(rows, tile_rows)
    needs_row_mask = (rows % tile_rows) != 0

    kernel = _make_loss_kernel(
        lamda=float(lamda), n_rows=n, n_cls=num_classes, tile_rows=tile_rows,
        lane=lane, n_valid_rows=rows, total_elems=total,
        needs_row_mask=needs_row_mask)

    item = jnp.dtype(inputs.dtype).itemsize
    cost = pl.CostEstimate(
        flops=3 * rows * lane + 10 * n * num_classes,
        transcendentals=n * num_classes + n,
        bytes_accessed=(2 * rows * lane * item
                        + output.size * jnp.dtype(output.dtype).itemsize
                        + n * 4 + 8 * 128 * 4),
    )

    # TODO(synk): for very large n*num_classes, tile the CE over rows instead
    # of holding logits/labels resident in VMEM.
    out = pl.pallas_call(
        kernel,
        out_shape=jax.ShapeDtypeStruct((8, 128), jnp.float32),
        grid=(grid_steps,),
        in_specs=[
            pl.BlockSpec((n, num_classes), lambda i: (0, 0)),    # logits (resident)
            pl.BlockSpec((n, 1), lambda i: (0, 0)),              # labels (resident)
            pl.BlockSpec((tile_rows, lane), lambda i: (i, 0)),   # inputs stream
            pl.BlockSpec((tile_rows, lane), lambda i: (i, 0)),   # deconvs stream
        ],
        out_specs=pl.BlockSpec((8, 128), lambda i: (0, 0)),
        scratch_shapes=[pltpu.VMEM((8, lane), jnp.float32)],
        compiler_params=pltpu.CompilerParams(
            dimension_semantics=("arbitrary",),
            vmem_limit_bytes=32 * 1024 * 1024,
        ),
        cost_estimate=cost,
    )(output, labels2d, x2d, d2d)

    return out[0, 0]


def _reference_loss(output, labels, deconvs, inputs, lamda=1.0):
    logits = output.astype(jnp.float32)
    lse = jax.scipy.special.logsumexp(logits, axis=-1)
    picked = jnp.take_along_axis(logits, labels[:, None].astype(jnp.int32),
                                 axis=-1)[:, 0]
    ce = jnp.mean(lse - picked)
    mse = jnp.mean((inputs.astype(jnp.float32) - deconvs.astype(jnp.float32)) ** 2)
    return ce + lamda * mse


if __name__ == "__main__":
    key = jax.random.PRNGKey(0)
    k1, k2, k3, k4 = jax.random.split(key, 4)

    N, NUM_CLASSES = 2, 10
    B, C, H, W = 2, 4, 16, 16

    output = jax.random.normal(k1, (N, NUM_CLASSES), dtype=jnp.float32)
    labels = jax.random.randint(k2, (N,), 0, NUM_CLASSES, dtype=jnp.int32)
    inputs = jax.random.normal(k3, (B, C, H, W), dtype=jnp.float32)
    deconvs = jax.random.normal(k4, (B, C, H, W), dtype=jnp.float32)

    loss = custom_loss(output, labels, deconvs, inputs, lamda=1.0)
    jax.block_until_ready(loss)

    ref = _reference_loss(output, labels, deconvs, inputs, lamda=1.0)
    assert jnp.allclose(loss, ref, rtol=1e-5, atol=1e-5), (loss, ref)

    print("KERNEL_OK")
</pallas_src>

<mosaic_0001>
module attributes {stable_mosaic.version = 11 : i64} {
  func.func @loss_kernel(%arg0: i32, %arg1: memref<2x10xf32, #tpu.memory_space<vmem>>, %arg2: memref<2x1xi32, #tpu.memory_space<vmem>>, %arg3: memref<4x512xf32, #tpu.memory_space<vmem>>, %arg4: memref<4x512xf32, #tpu.memory_space<vmem>>, %arg5: memref<8x128xf32, #tpu.memory_space<vmem>>, %arg6: memref<8x512xf32, #tpu.memory_space<vmem>>) attributes {dimension_semantics = [#tpu.dimension_semantics<arbitrary>], iteration_bounds = array<i64: 1>, scalar_prefetch = 0 : i64, scratch_operands = 1 : i64, tpu.core_type = #tpu.core_type<tc>, window_params = [{pipeline_mode = #tpu.pipeline_mode<synchronous>, transform_indices = @transform_0, window_bounds = array<i64: 2, 10>}, {pipeline_mode = #tpu.pipeline_mode<synchronous>, transform_indices = @transform_1, window_bounds = array<i64: 2, 1>}, {transform_indices = @transform_2, window_bounds = array<i64: 4, 512>}, {transform_indices = @transform_3, window_bounds = array<i64: 4, 512>}, {pipeline_mode = #tpu.pipeline_mode<synchronous>, transform_indices = @transform_4, window_bounds = array<i64: 8, 128>}]} {
    %c0_i32 = arith.constant 0 : i32
    %0 = arith.cmpi eq, %arg0, %c0_i32 : i32
    %1 = arith.extui %0 : i1 to i32
    %c0_i32_0 = arith.constant 0 : i32
    %2 = arith.cmpi ne, %1, %c0_i32_0 : i32
    scf.if %2 {
      %cst_10 = arith.constant 0.000000e+00 : f32
      %15 = vector.broadcast %cst_10 : f32 to vector<8x512xf32>
      %c0_11 = arith.constant 0 : index
      %c0_12 = arith.constant 0 : index
      %16 = vector.load %arg6[%c0_11, %c0_12] : memref<8x512xf32, #tpu.memory_space<vmem>>, vector<8x512xf32>
      tpu.vector_store %arg6[%c0_11, %c0_12], %15 {strides = array<i32>} : memref<8x512xf32, #tpu.memory_space<vmem>>, vector<8x512xf32>,
      %c0_13 = arith.constant 0 : index
      %c0_14 = arith.constant 0 : index
      %17 = vector.load %arg1[%c0_13, %c0_14] : memref<2x10xf32, #tpu.memory_space<vmem>>, vector<2x10xf32>
      %cst_15 = arith.constant dense<0xFF800000> : vector<2xf32>
      %18 = vector.multi_reduction <maximumf>, %17, %cst_15 [1] : vector<2x10xf32> to vector<2xf32>
      %19 = vector.shape_cast %18 : vector<2xf32> to vector<2x1xf32>
      %20 = vector.broadcast %19 : vector<2x1xf32> to vector<2x10xf32>
      %21 = arith.subf %17, %20 : vector<2x10xf32>
      %22 = math.exp %21 : vector<2x10xf32>
      %cst_16 = arith.constant dense<0.000000e+00> : vector<2xf32>
      %23 = vector.multi_reduction <add>, %22, %cst_16 [1] : vector<2x10xf32> to vector<2xf32>
      %24 = vector.shape_cast %23 : vector<2xf32> to vector<2x1xf32>
      %25 = math.log %24 : vector<2x1xf32>
      %26 = arith.addf %19, %25 : vector<2x1xf32>
      %c0_17 = arith.constant 0 : index
      %c0_18 = arith.constant 0 : index
      %27 = vector.load %arg2[%c0_17, %c0_18] : memref<2x1xi32, #tpu.memory_space<vmem>>, vector<2x1xi32>
      %28 = tpu.iota {dimensions = array<i32: 1>} : vector<2x10xi32>
      %29 = vector.broadcast %27 : vector<2x1xi32> to vector<2x10xi32>
      %30 = arith.cmpi eq, %28, %29 : vector<2x10xi32>
      %cst_19 = arith.constant 0.000000e+00 : f32
      %31 = vector.broadcast %cst_19 : f32 to vector<2x10xf32>
      %32 = arith.select %30, %17, %31 : vector<2x10xi1>, vector<2x10xf32>
      %cst_20 = arith.constant dense<0.000000e+00> : vector<2xf32>
      %33 = vector.multi_reduction <add>, %32, %cst_20 [1] : vector<2x10xf32> to vector<2xf32>
      %34 = vector.shape_cast %33 : vector<2xf32> to vector<2x1xf32>
      %35 = arith.subf %26, %34 : vector<2x1xf32>
      %36 = vector.shape_cast %35 : vector<2x1xf32> to vector<1x2x1xf32>
      %cst_21 = arith.constant dense<0.000000e+00> : vector<1xf32>
      %37 = vector.multi_reduction <add>, %36, %cst_21 [1, 2] : vector<1x2x1xf32> to vector<1xf32>
      %38 = vector.shape_cast %37 : vector<1xf32> to vector<1x1x1xf32>
      %39 = vector.extract %38[0, 0, 0] : f32 from vector<1x1x1xf32>
      %cst_22 = arith.constant 5.000000e-01 : f32
      %40 = arith.mulf %39, %cst_22 : f32
      %41 = vector.broadcast %40 : f32 to vector<8x128xf32>
      %c0_23 = arith.constant 0 : index
      %c0_24 = arith.constant 0 : index
      %42 = vector.load %arg5[%c0_23, %c0_24] : memref<8x128xf32, #tpu.memory_space<vmem>>, vector<8x128xf32>
      tpu.vector_store %arg5[%c0_23, %c0_24], %41 {strides = array<i32>} : memref<8x128xf32, #tpu.memory_space<vmem>>, vector<8x128xf32>,
    } else {
    }
    %c0 = arith.constant 0 : index
    %c0_1 = arith.constant 0 : index
    %3 = vector.load %arg3[%c0, %c0_1] : memref<4x512xf32, #tpu.memory_space<vmem>>, vector<4x512xf32>
    %c0_2 = arith.constant 0 : index
    %c0_3 = arith.constant 0 : index
    %4 = vector.load %arg4[%c0_2, %c0_3] : memref<4x512xf32, #tpu.memory_space<vmem>>, vector<4x512xf32>
    %5 = arith.subf %3, %4 : vector<4x512xf32>
    %6 = arith.mulf %5, %5 : vector<4x512xf32>
    %c0_4 = arith.constant 0 : index
    %c0_5 = arith.constant 0 : index
    %7 = vector.load %arg6[%c0_4, %c0_5] : memref<8x512xf32, #tpu.memory_space<vmem>>, vector<1x512xf32>
    %cst = arith.constant dense<0.000000e+00> : vector<512xf32>
    %8 = vector.multi_reduction <add>, %6, %cst [0] : vector<4x512xf32> to vector<512xf32>
    %9 = vector.shape_cast %8 : vector<512xf32> to vector<1x512xf32>
    %10 = arith.addf %7, %9 : vector<1x512xf32>
    %c0_6 = arith.constant 0 : index
    %c0_7 = arith.constant 0 : index
    %11 = vector.load %arg6[%c0_6, %c0_7] : memref<8x512xf32, #tpu.memory_space<vmem>>, vector<1x512xf32>
    tpu.vector_store %arg6[%c0_6, %c0_7], %10 {strides = array<i32>} : memref<8x512xf32, #tpu.memory_space<vmem>>, vector<1x512xf32>,
    %c0_i32_8 = arith.constant 0 : i32
    %12 = arith.cmpi eq, %arg0, %c0_i32_8 : i32
    %13 = arith.extui %12 : i1 to i32
    %c0_i32_9 = arith.constant 0 : i32
    %14 = arith.cmpi ne, %13, %c0_i32_9 : i32
    scf.if %14 {
      %c0_10 = arith.constant 0 : index
      %c0_11 = arith.constant 0 : index
      %15 = vector.load %arg6[%c0_10, %c0_11] : memref<8x512xf32, #tpu.memory_space<vmem>>, vector<8x512xf32>
      %16 = vector.shape_cast %15 : vector<8x512xf32> to vector<1x8x512xf32>
      %cst_12 = arith.constant dense<0.000000e+00> : vector<1xf32>
      %17 = vector.multi_reduction <add>, %16, %cst_12 [1, 2] : vector<1x8x512xf32> to vector<1xf32>
      %18 = vector.shape_cast %17 : vector<1xf32> to vector<1x1x1xf32>
      %19 = vector.extract %18[0, 0, 0] : f32 from vector<1x1x1xf32>
      %c0_13 = arith.constant 0 : index
      %c0_14 = arith.constant 0 : index
      %20 = vector.load %arg5[%c0_13, %c0_14] : memref<8x128xf32, #tpu.memory_space<vmem>>, vector<8x128xf32>
      %cst_15 = arith.constant 4.8828125E-4 : f32
      %21 = arith.mulf %cst_15, %19 : f32
      %22 = vector.broadcast %21 : f32 to vector<8x128xf32>
      %23 = arith.addf %20, %22 : vector<8x128xf32>
      %c0_16 = arith.constant 0 : index
      %c0_17 = arith.constant 0 : index
      %24 = vector.load %arg5[%c0_16, %c0_17] : memref<8x128xf32, #tpu.memory_space<vmem>>, vector<8x128xf32>
      tpu.vector_store %arg5[%c0_16, %c0_17], %23 {strides = array<i32>} : memref<8x128xf32, #tpu.memory_space<vmem>>, vector<8x128xf32>,
    } else {
    }
    return
  }
  func.func @transform_0(%arg0: i32) -> (i32, i32) {
    %c0_i32 = arith.constant 0 : i32
    %c0_i32_0 = arith.constant 0 : i32
    %c0_i32_1 = arith.constant 0 : i32
    return %c0_i32, %c0_i32_0 : i32, i32
  }
  func.func @transform_1(%arg0: i32) -> (i32, i32) {
    %c0_i32 = arith.constant 0 : i32
    %c0_i32_0 = arith.constant 0 : i32
    %c0_i32_1 = arith.constant 0 : i32
    return %c0_i32, %c0_i32_0 : i32, i32
  }
  func.func @transform_2(%arg0: i32) -> (i32, i32) {
    %c0_i32 = arith.constant 0 : i32
    %c0_i32_0 = arith.constant 0 : i32
    return %arg0, %c0_i32 : i32, i32
  }
  func.func @transform_3(%arg0: i32) -> (i32, i32) {
    %c0_i32 = arith.constant 0 : i32
    %c0_i32_0 = arith.constant 0 : i32
    return %arg0, %c0_i32 : i32, i32
  }
  func.func @transform_4(%arg0: i32) -> (i32, i32) {
    %c0_i32 = arith.constant 0 : i32
    %c0_i32_0 = arith.constant 0 : i32
    %c0_i32_1 = arith.constant 0 : i32
    return %c0_i32, %c0_i32_0 : i32, i32
  }
}

</mosaic_0001>

<llo_original>
// kernel: tpu_custom_call.1
$region0: #{tpu_custom_call.1}
  #allocation0 [shape = 'u32[]', space=smem, size = 0x4, offset = 0x4, fixed_abs, tag = 'smem constant byte address 0x4 - core index']
  #allocation1 [shape = 'u32[144,128]{1,0:T(1,128)}', space=vmem, size = 0x12000, scoped, tag = 'internal scratch']
  #allocation2 [shape = 'f32[8,512]{1,0:T(8,128)}', space=vmem, size = 0x4000, scoped, tag = 'scratch operand']
  %s0 = inlined_call_operand.vmem [shape: f32[2,10], index: 0, kind: input, shape index: {}]
  %s1 = inlined_call_operand.vmem [shape: s32[2,1], index: 1, kind: input, shape index: {}]
  %s2 = inlined_call_operand.hbm [shape: f32[4,512], index: 2, kind: input, shape index: {}]
  %s3 = inlined_call_operand.hbm [shape: f32[4,512], index: 3, kind: input, shape index: {}]
  %s4 = inlined_call_operand.hbm [shape: f32[8,128], index: 4, kind: output, shape index: {}]
  %s5 = sld [smem:[#allocation0]]
  $region42: #{tpu_custom_call.1} parent=0
    _
  %s7 = ssub.s32 1, %s5
  %s8 = scalar_select 0, %s7, %s5
  $region1: #{tpu_custom_call.1} parent=0
    #allocation3 [shape = 'u8[8192]{0}', space=vmem, size = 0x2000, scoped, tag = 'input window, operand 2, single buffered']
    #allocation4 [shape = 's32[1]{0}', space=sflag, size = 0x4, scoped, tag = 'scoped memory for tpu_custom_call.1']
    #allocation5 [shape = 's32[1]{0}', space=sflag, size = 0x4, scoped, tag = 'scoped memory for tpu_custom_call.1']
    #allocation6 [shape = 'u8[8192]{0}', space=vmem, size = 0x2000, scoped, tag = 'input window, operand 3, single buffered']
    #allocation7 [shape = 's32[1]{0}', space=sflag, size = 0x4, scoped, tag = 'scoped memory for tpu_custom_call.1']
    #allocation8 [shape = 'u8[4096]{0}', space=vmem, size = 0x1000, scoped, tag = 'output window, operand 0, single buffered']
    %9 = vsyncpa [#allocation4], 0
    %10 = vsyncpa [#allocation7], 0
    %11 = vsyncpa [#allocation5], 0
    // Predicated region
    $region2: #{tpu_custom_call.1} parent=1 // pred_check
      _
    $region3: #{tpu_custom_call.1} parent=1 // pred_check_branch
      %13 = sbr.rel (0) target = $region5
    $region4: #{tpu_custom_call.1} parent=1 // pred_region
      _
    $region5: #{tpu_custom_call.1} parent=1 // pred_fallthru
      _
    // Predicated region
    $region6: #{tpu_custom_call.1} parent=1 // pred_check
      _
    $region7: #{tpu_custom_call.1} parent=1 // pred_check_branch
      %15 = sbr.rel (0) target = $region9
    $region8: #{tpu_custom_call.1} parent=1 // pred_region
      _
    $region9: #{tpu_custom_call.1} parent=1 // pred_fallthru
      _
    // Predicated region
    $region10: #{tpu_custom_call.1} parent=1 // pred_check
      _
    $region11: #{tpu_custom_call.1} parent=1 // pred_check_branch
      %17 = sbr.rel (0) target = $region13
    $region12: #{tpu_custom_call.1} parent=1 // pred_region
      %s19 = ssub.s32 256, 256
      %20 = vsyncadd [#allocation4], %s19
      %s22 = sshll.u32 [#allocation3], 4
      %s23 = int_to_ptr.vmem [resolvable:$true] %s22
      %25 = dma.hbm_to_vmem [thread:$0]  %s2, 256, %s23, [#allocation4]
    $region13: #{tpu_custom_call.1} parent=1 // pred_fallthru
      _
    // Predicated region
    $region14: #{tpu_custom_call.1} parent=1 // pred_check
      _
    $region15: #{tpu_custom_call.1} parent=1 // pred_check_branch
      %27 = sbr.rel (0) target = $region17
    $region16: #{tpu_custom_call.1} parent=1 // pred_region
      %s29 = ssub.s32 256, 256
      %30 = vsyncadd [#allocation7], %s29
      %s32 = sshll.u32 [#allocation6], 4
      %s33 = int_to_ptr.vmem [resolvable:$true] %s32
      %35 = dma.hbm_to_vmem [thread:$0]  %s3, 256, %s33, [#allocation7]
    $region17: #{tpu_custom_call.1} parent=1 // pred_fallthru
      _
    // Predicated region
    $region18: #{tpu_custom_call.1} parent=1 // pred_check
      _
    $region19: #{tpu_custom_call.1} parent=1 // pred_check_branch
      %37 = sbr.rel (0) target = $region21
    $region20: #{tpu_custom_call.1} parent=1 // pred_region
      %38 = dma.done [#allocation4], 256
    $region21: #{tpu_custom_call.1} parent=1 // pred_fallthru
      _
    // Predicated region
    $region22: #{tpu_custom_call.1} parent=1 // pred_check
      _
    $region23: #{tpu_custom_call.1} parent=1 // pred_check_branch
      %40 = sbr.rel (0) target = $region25
    $region24: #{tpu_custom_call.1} parent=1 // pred_region
      %41 = dma.done [#allocation7], 256
    $region25: #{tpu_custom_call.1} parent=1 // pred_fallthru
      _
    %p42 = scmp.eq.s32.totalorder 0, 0
    // Predicated region
    $region26: #{tpu_custom_call.1} parent=1 // pred_check
      %p43 = pneg %p42
    $region27: #{tpu_custom_call.1} parent=1 // pred_check_branch
      %45 = sbr.rel (%p43) target = $region29
    $region28: #{tpu_custom_call.1} parent=1 // pred_region
      %46 = vst [vmem:[#allocation2] sm:$0xff] 0.0
      %47 = vst [vmem:[#allocation2 + $0x8] sm:$0xff] 0.0
      %48 = vst [vmem:[#allocation2 + $0x10] sm:$0xff] 0.0
      %49 = vst [vmem:[#allocation2 + $0x18] sm:$0xff] 0.0
      %v50 = vld [vmem:[%s0] sm:$0x3]
      %vm51 = vcmask 74752
      %v52 = vsel %vm51, %v50, -inf
      %53 = vmax.xlane.f32.xlu0 %v52
      %v54 = vpop.xlane.xlu0 %53
      %v55 = vsub.f32 %v50, %v54
      %v56 = vmul.f32 %v55, 1.442695
      %v57 = vpow.pop %v56
      %v58 = vsel %vm51, %v57, 0.0
      %59 = vadd.xlane.f32.xlu0 %v58
      %v60 = vpop.xlane.xlu0 %59
      %v61 = vlog2.pop %v60
      %v62 = vmul.f32 %v61, 0.6931472
      %v63 = vadd.f32 %v54, %v62
      %v64 = vld [vmem:[%s1] sm:$0x3]
      %v65 = vlaneseq
      %v66 = vand.u32 %v65, 127
      %67 = vset.pattern.permute.xlu0 0
      %68 = vperm.xlu0 %67, %v64
      %v69 = vpop.permute.xlu0 %68
      %vm70 = vcmp.eq.s32.totalorder %v66, %v69
      %v71 = vsel %vm70, %v50, 0.0
      %v72 = vsel %vm51, %v71, 0.0
      %73 = vadd.xlane.f32.xlu0 %v72
      %v74 = vpop.xlane.xlu0 %73
      %v75 = vsub.f32 %v63, %v74
      %vm76 = vcmask 1024
      %v77 = vsel %vm76, %v75, 0.0
      %78 = vadd.xlane.f32.xlu0 %v77
      %v79 = vpop.xlane.xlu0 %78
      %v80 = vrot.slane %v79, 4
      %v81 = vadd.f32 %v79, %v80
      %v82 = vrot.slane %v81, 2
      %v83 = vadd.f32 %v81, %v82
      %v84 = vrot.slane %v83, 1
      %v85 = vadd.f32 %v83, %v84
      %s86 = vtos %v85
      %s87 = smul.f32 %s86, 0.5
      %v88 = vstv %s87
      %89 = vst [vmem:[#allocation8] sm:$0xff] %v88
    $region29: #{tpu_custom_call.1} parent=1 // pred_fallthru
      _
    %v90 = vld [vmem:[#allocation3] sm:$0xff]
    %v91 = vld [vmem:[#allocation3 + $0x8] sm:$0xff]
    %v92 = vld [vmem:[#allocation6] sm:$0xff]
    %v93 = vld [vmem:[#allocation6 + $0x8] sm:$0xff]
    %v94 = vsub.f32 %v90, %v92
    %v95 = vsub.f32 %v91, %v93
    %v96 = vmul.f32 %v94, %v94
    %v97 = vmul.f32 %v95, %v95
    %v98 = vld [vmem:[#allocation2] ss:$8 sm:$0xf]
    %v101 = vcombine.high %v96, %v96
    %v102 = vcombine.high %v97, %v97
    %vm105 = vcmask 1043456
    %v106 = vsel %vm105, %v96, 0.0
    %v107 = vrot.slane %v106, 4
    %v108 = vadd.f32 %v106, %v107
    %v109 = vrot.slane %v108, 2
    %v110 = vadd.f32 %v108, %v109
    %v111 = vrot.slane %v110, 1
    %v112 = vadd.f32 %v110, %v111
    %v113 = vsel %vm105, %v101, 0.0
    %v114 = vrot.slane %v113, 4
    %v115 = vadd.f32 %v113, %v114
    %v116 = vrot.slane %v115, 2
    %v117 = vadd.f32 %v115, %v116
    %v118 = vrot.slane %v117, 1
    %v119 = vadd.f32 %v117, %v118
    %v120 = vsel %vm105, %v97, 0.0
    %v121 = vrot.slane %v120, 4
    %v122 = vadd.f32 %v120, %v121
    %v123 = vrot.slane %v122, 2
    %v124 = vadd.f32 %v122, %v123
    %v125 = vrot.slane %v124, 1
    %v126 = vadd.f32 %v124, %v125
    %v127 = vsel %vm105, %v102, 0.0
    %v128 = vrot.slane %v127, 4
    %v129 = vadd.f32 %v127, %v128
    %v130 = vrot.slane %v129, 2
    %v131 = vadd.f32 %v129, %v130
    %v132 = vrot.slane %v131, 1
    %v133 = vadd.f32 %v131, %v132
    %v138 = vcombine.low %v112, %v119
    %v139 = vcombine.low %v126, %v133
    %v141 = vunpack.c.l.s4 1966171168
    %v142 = vunpack.c.0.s8 %v141
    %v143 = vlaneseq
    %v144 = vshrl.u32 %v143, 7
    %v145 = vsub.s32 %v142, %v144
    %v146 = vrot.slane %v138, %v145
    %v148 = vunpack.c.l.s4 1966171168
    %v149 = vunpack.c.0.s8 %v148
    %v150 = vlaneseq
    %v151 = vshrl.u32 %v150, 7
    %v152 = vsub.s32 %v149, %v151
    %v153 = vrot.slane %v139, %v152
    %v154 = vcombine.low %v146, %v153
    %v156 = vunpack.c.l.s4 1966171168
    %v157 = vunpack.c.0.s8 %v156
    %v158 = vlaneseq
    %v159 = vshrl.u32 %v158, 7
    %v160 = vsub.s32 %v157, %v159
    %v161 = vrot.slane %v154, %v160
    %v163 = vadd.f32 %v98, %v161
    %v164 = vlaneseq
    %vm165 = vcmp.ge.s32.totalorder %v164, 0
    %vm166 = vcmp.lt.s32.totalorder %v164, 512
    %vm167 = vmand %vm165, %vm166
    %168 = vst.msk [vmem:[#allocation2] ss:$8 sm:$0xf] %vm167, %v163
    %169 = vst.msk [vmem:[#allocation2] ss:$8 sm:$0x0] %vm167, %v163
    // Predicated region
    $region30: #{tpu_custom_call.1} parent=1 // pred_check
      %p170 = pneg %p42
    $region31: #{tpu_custom_call.1} parent=1 // pred_check_branch
      %172 = sbr.rel (%p170) target = $region33
    $region32: #{tpu_custom_call.1} parent=1 // pred_region
      %v173 = vld [vmem:[#allocation2] sm:$0xff]
      %v174 = vld [vmem:[#allocation2 + $0x8] sm:$0xff]
      %v175 = vld [vmem:[#allocation2 + $0x10] sm:$0xff]
      %v176 = vld [vmem:[#allocation2 + $0x18] sm:$0xff]
      %v177 = vadd.f32 %v173, %v174
      %v178 = vadd.f32 %v177, %v175
      %v179 = vadd.f32 %v178, %v176
      %180 = vadd.xlane.f32.xlu0 %v179
      %v181 = vpop.xlane.xlu0 %180
      %v182 = vrot.slane %v181, 4
      %v183 = vadd.f32 %v181, %v182
      %v184 = vrot.slane %v183, 2
      %v185 = vadd.f32 %v183, %v184
      %v186 = vrot.slane %v185, 1
      %v187 = vadd.f32 %v185, %v186
      %s188 = vtos %v187
      %v189 = vld [vmem:[#allocation8] sm:$0xff]
      %s190 = smul.f32 %s188, 0.00048828125
      %v191 = vstv %s190
      %v192 = vadd.f32 %v189, %v191
      %193 = vst [vmem:[#allocation8] sm:$0xff] %v192
    $region33: #{tpu_custom_call.1} parent=1 // pred_fallthru
      _
    // Predicated region
    $region34: #{tpu_custom_call.1} parent=1 // pred_check
      _
    $region35: #{tpu_custom_call.1} parent=1 // pred_check_branch
      %195 = sbr.rel (0) target = $region37
    $region36: #{tpu_custom_call.1} parent=1 // pred_region
      %s197 = ssub.s32 128, 128
      %198 = vsyncadd [#allocation5], %s197
      %s200 = sshll.u32 [#allocation8], 4
      %s201 = int_to_ptr.vmem [resolvable:$true] %s200
      %203 = dma.vmem_to_hbm [thread:$0]  %s201, 128, %s4, [#allocation5]
    $region37: #{tpu_custom_call.1} parent=1 // pred_fallthru
      _
    // Predicated region
    $region38: #{tpu_custom_call.1} parent=1 // pred_check
      _
    $region39: #{tpu_custom_call.1} parent=1 // pred_check_branch
      %205 = sbr.rel (0) target = $region41
    $region40: #{tpu_custom_call.1} parent=1 // pred_region
      %206 = dma.done [#allocation5], 128
    $region41: #{tpu_custom_call.1} parent=1 // pred_fallthru
      _
    %207 = vsyncpa [#allocation4], 1
    %208 = vsyncpa [#allocation7], 1
    %209 = vsyncpa [#allocation5], 1

</llo_original>
